<compile_context>
chip_gen: v7x
topology: tpu7x:2x2x1
jax: 0.10.0
libtpu: 0.0.40
codegen_flags: <defaults>
</compile_context>

<pallas_src>
import functools

import jax
import jax.numpy as jnp
from jax.experimental import pallas as pl
from jax.experimental.pallas import tpu as pltpu

VMEM = pltpu.MemorySpace.VMEM
SMEM = pltpu.MemorySpace.SMEM


# ---------------------------------------------------------------------------
# Fused forward kernel
# ---------------------------------------------------------------------------
def _fused_kernel(img_ref, att_ref, cnn_w_ref, w1_ref, w2_ref, pvec_ref,
                  emb_ref, corr_ref, *, B, E, margin, p):
    # Packed per-feature parameter vectors: rows = [cnn_b, b1, gamma, beta, b2]
    pvec = pvec_ref[...]                       # (5, E) f32
    cnn_b = pvec[0:1, :]
    b1 = pvec[1:2, :]
    gamma = pvec[2:3, :]
    beta = pvec[3:4, :]
    b2 = pvec[4:5, :]

    # ---- CNN stand-in: flattened image @ W + b (bf16 MXU, f32 accumulate) ----
    img_e = (
        jnp.dot(img_ref[...].astype(jnp.bfloat16), cnn_w_ref[...],
                preferred_element_type=jnp.float32)
        + cnn_b
    )

    # ---- AttNet (shared weights, per-branch BatchNorm batch statistics) ----
    w1 = w1_ref[...]                           # (40, E) bf16
    w2 = w2_ref[...]                           # (E, E)  bf16
    att = att_ref[...]                         # (2B, 40) f32  [att_p ; att_n]

    def attnet_branch(a):
        h = (
            jnp.dot(a.astype(jnp.bfloat16), w1,
                    preferred_element_type=jnp.float32)
            + b1
        )
        # BatchNorm1d, training mode: biased batch stats, eps=1e-3, folded into
        # a single scale/shift (one fused multiply-add per element, rsqrt on EUP).
        mean = jnp.mean(h, axis=0, keepdims=True)
        var = jnp.mean(h * h, axis=0, keepdims=True) - mean * mean
        scale = gamma * jax.lax.rsqrt(var + 1e-3)
        shift = beta - mean * scale
        h = jnp.maximum(h * scale + shift, 0.0)            # ReLU
        return (
            jnp.dot(h.astype(jnp.bfloat16), w2,
                    preferred_element_type=jnp.float32)
            + b2
        )

    ap_e = attnet_branch(att[:B, :])
    an_e = attnet_branch(att[B:, :])

    # ---- L2 normalization (rsqrt-multiply; matches x.div(x.norm(p=2))) ----
    def l2norm(x):
        n2 = jnp.sum(x * x, axis=1, keepdims=True)
        return x * jax.lax.rsqrt(n2)

    img_n = l2norm(img_e)
    ap_n = l2norm(ap_e)
    an_n = l2norm(an_e)

    # ---- pairwise distances (F.pairwise_distance semantics, eps=1e-6) ----
    eps = 1e-6

    def pdist(a, b):
        d = a - b + eps
        if p == 2.0:
            return jnp.sqrt(jnp.sum(d * d, axis=1, keepdims=True))
        if p == 1.0:
            return jnp.sum(jnp.abs(d), axis=1, keepdims=True)
        ad = jnp.abs(d)
        s = jnp.sum(jnp.exp(jnp.log(ad) * p), axis=1, keepdims=True)
        return jnp.exp(jnp.log(s) * (1.0 / p))

    d_p = pdist(img_n, ap_n)                   # (B, 1)
    d_n = pdist(img_n, an_n)                   # (B, 1)

    # margin count -> scalar int32 in SMEM
    corr_ref[0] = jnp.sum(((d_n - d_p) > margin).astype(jnp.int32))

    # ---- lane-dense packed output: [img_n | ap_n | an_n | zero-pad] ----
    pad_cols = emb_ref.shape[1] - 3 * E
    parts = [img_n, ap_n, an_n]
    if pad_cols > 0:
        parts.append(jnp.zeros((B, pad_cols), jnp.float32))
    emb_ref[...] = jnp.concatenate(parts, axis=1)


# ---------------------------------------------------------------------------
# Full forward pass (single pallas_call)
# ---------------------------------------------------------------------------
def model_forward(img, att_p, att_n, params, margin, norm_degree):
    B = img.shape[0]
    E = params["w2"].shape[1]
    img_flat = img.reshape(B, -1)                          # NCHW flattened

    # Pack both AttNet branch inputs into one slab (one DMA, shared weights).
    att = jnp.concatenate([att_p, att_n], axis=0)          # (2B, 40)

    # Pack tiny per-feature parameter vectors into a single (5, E) slab.
    pvec = jnp.stack(
        [params["cnn_b"], params["b1"], params["gamma"],
         params["beta"], params["b2"]], axis=0
    ).astype(jnp.float32)

    # Lane-dense output width (multiple of 128 lanes) -> unmasked vst.
    P = ((3 * E + 127) // 128) * 128

    kernel = functools.partial(
        _fused_kernel, B=B, E=E, margin=float(margin), p=float(norm_degree)
    )

    emb, correct = pl.pallas_call(
        kernel,
        out_shape=(
            jax.ShapeDtypeStruct((B, P), jnp.float32),
            jax.ShapeDtypeStruct((1,), jnp.int32),
        ),
        in_specs=[pl.BlockSpec(memory_space=VMEM)] * 6,
        out_specs=(
            pl.BlockSpec(memory_space=VMEM),
            pl.BlockSpec(memory_space=SMEM),
        ),
    )(
        img_flat,
        att,
        params["cnn_w"].astype(jnp.bfloat16),
        params["w1"].astype(jnp.bfloat16),
        params["w2"].astype(jnp.bfloat16),
        pvec,
    )

    img_n = emb[:, 0:E]
    ap_n = emb[:, E:2 * E]
    an_n = emb[:, 2 * E:3 * E]
    return img_n, ap_n, an_n, correct


# ---------------------------------------------------------------------------
# Pure-JAX reference (f32) for a sanity check of the fused kernel
# ---------------------------------------------------------------------------
def _reference_forward(img, att_p, att_n, params):
    B = img.shape[0]
    x = img.reshape(B, -1) @ params["cnn_w"] + params["cnn_b"]

    def attnet(a):
        h = a @ params["w1"] + params["b1"]
        mean = jnp.mean(h, axis=0, keepdims=True)
        var = jnp.mean((h - mean) ** 2, axis=0, keepdims=True)
        h = (h - mean) / jnp.sqrt(var + 1e-3) * params["gamma"] + params["beta"]
        h = jnp.maximum(h, 0.0)
        return h @ params["w2"] + params["b2"]

    def l2n(v):
        return v / jnp.linalg.norm(v, axis=1, keepdims=True)

    return l2n(x), l2n(attnet(att_p)), l2n(attnet(att_n))


if __name__ == "__main__":
    # hyperparameters
    margin = 0.2
    norm_degree = 2.0
    E = 32              # embedding_dimensionality
    B, C, H, W = 4, 3, 16, 16
    ATT_DIM = 40

    key = jax.random.PRNGKey(0)
    k_img, k_ap, k_an, k_cnn, k_w1, k_w2 = jax.random.split(key, 6)

    img = jax.random.normal(k_img, (B, C, H, W), dtype=jnp.float32)
    att_p = jax.random.normal(k_ap, (B, ATT_DIM), dtype=jnp.float32)
    att_n = jax.random.normal(k_an, (B, ATT_DIM), dtype=jnp.float32)

    K = C * H * W
    params = {
        # CNN stand-in projection (deterministic init)
        "cnn_w": jax.random.normal(k_cnn, (K, E), dtype=jnp.float32)
        * jnp.sqrt(2.0 / K),
        "cnn_b": jnp.zeros((E,), dtype=jnp.float32),
        # AttNet fc_1 (Linear 40->E), init: normal(0, 0.01), bias 0
        "w1": jax.random.normal(k_w1, (ATT_DIM, E), dtype=jnp.float32) * 0.01,
        "b1": jnp.zeros((E,), dtype=jnp.float32),
        # BatchNorm1d: weight=1, bias=0
        "gamma": jnp.ones((E,), dtype=jnp.float32),
        "beta": jnp.zeros((E,), dtype=jnp.float32),
        # AttNet fc_2 (Linear E->E), init: normal(0, 0.01), bias 0
        "w2": jax.random.normal(k_w2, (E, E), dtype=jnp.float32) * 0.01,
        "b2": jnp.zeros((E,), dtype=jnp.float32),
    }

    img_out, attp_out, attn_out, correct = model_forward(
        img, att_p, att_n, params, margin, norm_degree
    )
    jax.block_until_ready((img_out, attp_out, attn_out, correct))

    assert img_out.shape == (B, E)
    assert attp_out.shape == (B, E)
    assert attn_out.shape == (B, E)
    assert correct.shape == (1,) and correct.dtype == jnp.int32
    assert bool(jnp.all(jnp.isfinite(img_out)))
    assert bool(jnp.all(jnp.isfinite(attp_out)))
    assert bool(jnp.all(jnp.isfinite(attn_out)))

    # Loose-tolerance check against the f32 reference (kernel matmuls are bf16).
    r_img, r_ap, r_an = _reference_forward(img, att_p, att_n, params)
    assert bool(jnp.allclose(img_out, r_img, atol=5e-2))
    assert bool(jnp.allclose(attp_out, r_ap, atol=5e-2))
    assert bool(jnp.allclose(attn_out, r_an, atol=5e-2))

    print("KERNEL_OK")
</pallas_src>

<mosaic_0001>
module attributes {stable_mosaic.version = 11 : i64} {
  func.func @_fused_kernel(%arg0: memref<4x768xf32, #tpu.memory_space<vmem>>, %arg1: memref<8x40xf32, #tpu.memory_space<vmem>>, %arg2: memref<768x32xbf16, #tpu.memory_space<vmem>>, %arg3: memref<40x32xbf16, #tpu.memory_space<vmem>>, %arg4: memref<32x32xbf16, #tpu.memory_space<vmem>>, %arg5: memref<5x32xf32, #tpu.memory_space<vmem>>, %arg6: memref<4x128xf32, #tpu.memory_space<vmem>>, %arg7: memref<1xi32, #tpu.memory_space<smem>>) attributes {dimension_semantics = [], scalar_prefetch = 0 : i64, scratch_operands = 0 : i64, tpu.core_type = #tpu.core_type<tc>} {
    %c0 = arith.constant 0 : index
    %c0_0 = arith.constant 0 : index
    %0 = vector.load %arg5[%c0, %c0_0] : memref<5x32xf32, #tpu.memory_space<vmem>>, vector<5x32xf32>
    %1 = vector.extract_strided_slice %0 {offsets = [0, 0], sizes = [1, 32], strides = [1, 1]} : vector<5x32xf32> to vector<1x32xf32>
    %2 = vector.extract_strided_slice %0 {offsets = [1, 0], sizes = [1, 32], strides = [1, 1]} : vector<5x32xf32> to vector<1x32xf32>
    %3 = vector.extract_strided_slice %0 {offsets = [2, 0], sizes = [1, 32], strides = [1, 1]} : vector<5x32xf32> to vector<1x32xf32>
    %4 = vector.extract_strided_slice %0 {offsets = [3, 0], sizes = [1, 32], strides = [1, 1]} : vector<5x32xf32> to vector<1x32xf32>
    %5 = vector.extract_strided_slice %0 {offsets = [4, 0], sizes = [1, 32], strides = [1, 1]} : vector<5x32xf32> to vector<1x32xf32>
    %c0_1 = arith.constant 0 : index
    %c0_2 = arith.constant 0 : index
    %6 = vector.load %arg0[%c0_1, %c0_2] : memref<4x768xf32, #tpu.memory_space<vmem>>, vector<4x768xf32>
    %7 = arith.truncf %6 : vector<4x768xf32> to vector<4x768xbf16>
    %c0_3 = arith.constant 0 : index
    %c0_4 = arith.constant 0 : index
    %8 = vector.load %arg2[%c0_3, %c0_4] : memref<768x32xbf16, #tpu.memory_space<vmem>>, vector<768x32xbf16>
    %cst = arith.constant dense<0.000000e+00> : vector<4x32xf32>
    %9 = tpu.matmul %7, %8, %cst {dimension_numbers = #tpu.dot_dimension_numbers<[1], [0], [0], [1], [0, 0, 1, 1], [], []>} : vector<4x768xbf16>, vector<768x32xbf16>, vector<4x32xf32> -> vector<4x32xf32>
    %10 = vector.broadcast %1 : vector<1x32xf32> to vector<4x32xf32>
    %11 = arith.addf %9, %10 : vector<4x32xf32>
    %c0_5 = arith.constant 0 : index
    %c0_6 = arith.constant 0 : index
    %12 = vector.load %arg3[%c0_5, %c0_6] : memref<40x32xbf16, #tpu.memory_space<vmem>>, vector<40x32xbf16>
    %c0_7 = arith.constant 0 : index
    %c0_8 = arith.constant 0 : index
    %13 = vector.load %arg4[%c0_7, %c0_8] : memref<32x32xbf16, #tpu.memory_space<vmem>>, vector<32x32xbf16>
    %c0_9 = arith.constant 0 : index
    %c0_10 = arith.constant 0 : index
    %14 = vector.load %arg1[%c0_9, %c0_10] : memref<8x40xf32, #tpu.memory_space<vmem>>, vector<8x40xf32>
    %15 = vector.extract_strided_slice %14 {offsets = [0, 0], sizes = [4, 40], strides = [1, 1]} : vector<8x40xf32> to vector<4x40xf32>
    %16 = arith.truncf %15 : vector<4x40xf32> to vector<4x40xbf16>
    %cst_11 = arith.constant dense<0.000000e+00> : vector<4x32xf32>
    %17 = tpu.matmul %16, %12, %cst_11 {dimension_numbers = #tpu.dot_dimension_numbers<[1], [0], [0], [1], [0, 0, 1, 1], [], []>} : vector<4x40xbf16>, vector<40x32xbf16>, vector<4x32xf32> -> vector<4x32xf32>
    %18 = vector.broadcast %2 : vector<1x32xf32> to vector<4x32xf32>
    %19 = arith.addf %17, %18 : vector<4x32xf32>
    %cst_12 = arith.constant dense<0.000000e+00> : vector<32xf32>
    %20 = vector.multi_reduction <add>, %19, %cst_12 [0] : vector<4x32xf32> to vector<32xf32>
    %21 = vector.shape_cast %20 : vector<32xf32> to vector<1x32xf32>
    %cst_13 = arith.constant 4.000000e+00 : f32
    %22 = vector.broadcast %cst_13 : f32 to vector<1x32xf32>
    %23 = arith.divf %21, %22 : vector<1x32xf32>
    %24 = arith.mulf %19, %19 : vector<4x32xf32>
    %cst_14 = arith.constant dense<0.000000e+00> : vector<32xf32>
    %25 = vector.multi_reduction <add>, %24, %cst_14 [0] : vector<4x32xf32> to vector<32xf32>
    %26 = vector.shape_cast %25 : vector<32xf32> to vector<1x32xf32>
    %cst_15 = arith.constant 4.000000e+00 : f32
    %27 = vector.broadcast %cst_15 : f32 to vector<1x32xf32>
    %28 = arith.divf %26, %27 : vector<1x32xf32>
    %29 = arith.mulf %23, %23 : vector<1x32xf32>
    %30 = arith.subf %28, %29 : vector<1x32xf32>
    %cst_16 = arith.constant 1.000000e-03 : f32
    %31 = vector.broadcast %cst_16 : f32 to vector<1x32xf32>
    %32 = arith.addf %30, %31 : vector<1x32xf32>
    %33 = math.rsqrt %32 : vector<1x32xf32>
    %34 = arith.mulf %3, %33 : vector<1x32xf32>
    %35 = arith.mulf %23, %34 : vector<1x32xf32>
    %36 = arith.subf %4, %35 : vector<1x32xf32>
    %37 = vector.broadcast %34 : vector<1x32xf32> to vector<4x32xf32>
    %38 = arith.mulf %19, %37 : vector<4x32xf32>
    %39 = vector.broadcast %36 : vector<1x32xf32> to vector<4x32xf32>
    %40 = arith.addf %38, %39 : vector<4x32xf32>
    %cst_17 = arith.constant 0.000000e+00 : f32
    %41 = vector.broadcast %cst_17 : f32 to vector<4x32xf32>
    %42 = arith.maximumf %40, %41 : vector<4x32xf32>
    %43 = arith.truncf %42 : vector<4x32xf32> to vector<4x32xbf16>
    %cst_18 = arith.constant dense<0.000000e+00> : vector<4x32xf32>
    %44 = tpu.matmul %43, %13, %cst_18 {dimension_numbers = #tpu.dot_dimension_numbers<[1], [0], [0], [1], [0, 0, 1, 1], [], []>} : vector<4x32xbf16>, vector<32x32xbf16>, vector<4x32xf32> -> vector<4x32xf32>
    %45 = vector.broadcast %5 : vector<1x32xf32> to vector<4x32xf32>
    %46 = arith.addf %44, %45 : vector<4x32xf32>
    %47 = vector.extract_strided_slice %14 {offsets = [4, 0], sizes = [4, 40], strides = [1, 1]} : vector<8x40xf32> to vector<4x40xf32>
    %48 = arith.truncf %47 : vector<4x40xf32> to vector<4x40xbf16>
    %cst_19 = arith.constant dense<0.000000e+00> : vector<4x32xf32>
    %49 = tpu.matmul %48, %12, %cst_19 {dimension_numbers = #tpu.dot_dimension_numbers<[1], [0], [0], [1], [0, 0, 1, 1], [], []>} : vector<4x40xbf16>, vector<40x32xbf16>, vector<4x32xf32> -> vector<4x32xf32>
    %50 = vector.broadcast %2 : vector<1x32xf32> to vector<4x32xf32>
    %51 = arith.addf %49, %50 : vector<4x32xf32>
    %cst_20 = arith.constant dense<0.000000e+00> : vector<32xf32>
    %52 = vector.multi_reduction <add>, %51, %cst_20 [0] : vector<4x32xf32> to vector<32xf32>
    %53 = vector.shape_cast %52 : vector<32xf32> to vector<1x32xf32>
    %cst_21 = arith.constant 4.000000e+00 : f32
    %54 = vector.broadcast %cst_21 : f32 to vector<1x32xf32>
    %55 = arith.divf %53, %54 : vector<1x32xf32>
    %56 = arith.mulf %51, %51 : vector<4x32xf32>
    %cst_22 = arith.constant dense<0.000000e+00> : vector<32xf32>
    %57 = vector.multi_reduction <add>, %56, %cst_22 [0] : vector<4x32xf32> to vector<32xf32>
    %58 = vector.shape_cast %57 : vector<32xf32> to vector<1x32xf32>
    %cst_23 = arith.constant 4.000000e+00 : f32
    %59 = vector.broadcast %cst_23 : f32 to vector<1x32xf32>
    %60 = arith.divf %58, %59 : vector<1x32xf32>
    %61 = arith.mulf %55, %55 : vector<1x32xf32>
    %62 = arith.subf %60, %61 : vector<1x32xf32>
    %cst_24 = arith.constant 1.000000e-03 : f32
    %63 = vector.broadcast %cst_24 : f32 to vector<1x32xf32>
    %64 = arith.addf %62, %63 : vector<1x32xf32>
    %65 = math.rsqrt %64 : vector<1x32xf32>
    %66 = arith.mulf %3, %65 : vector<1x32xf32>
    %67 = arith.mulf %55, %66 : vector<1x32xf32>
    %68 = arith.subf %4, %67 : vector<1x32xf32>
    %69 = vector.broadcast %66 : vector<1x32xf32> to vector<4x32xf32>
    %70 = arith.mulf %51, %69 : vector<4x32xf32>
    %71 = vector.broadcast %68 : vector<1x32xf32> to vector<4x32xf32>
    %72 = arith.addf %70, %71 : vector<4x32xf32>
    %cst_25 = arith.constant 0.000000e+00 : f32
    %73 = vector.broadcast %cst_25 : f32 to vector<4x32xf32>
    %74 = arith.maximumf %72, %73 : vector<4x32xf32>
    %75 = arith.truncf %74 : vector<4x32xf32> to vector<4x32xbf16>
    %cst_26 = arith.constant dense<0.000000e+00> : vector<4x32xf32>
    %76 = tpu.matmul %75, %13, %cst_26 {dimension_numbers = #tpu.dot_dimension_numbers<[1], [0], [0], [1], [0, 0, 1, 1], [], []>} : vector<4x32xbf16>, vector<32x32xbf16>, vector<4x32xf32> -> vector<4x32xf32>
    %77 = vector.broadcast %5 : vector<1x32xf32> to vector<4x32xf32>
    %78 = arith.addf %76, %77 : vector<4x32xf32>
    %79 = arith.mulf %11, %11 : vector<4x32xf32>
    %cst_27 = arith.constant dense<0.000000e+00> : vector<4xf32>
    %80 = vector.multi_reduction <add>, %79, %cst_27 [1] : vector<4x32xf32> to vector<4xf32>
    %81 = vector.shape_cast %80 : vector<4xf32> to vector<4x1xf32>
    %82 = math.rsqrt %81 : vector<4x1xf32>
    %83 = vector.broadcast %82 : vector<4x1xf32> to vector<4x32xf32>
    %84 = arith.mulf %11, %83 : vector<4x32xf32>
    %85 = arith.mulf %46, %46 : vector<4x32xf32>
    %cst_28 = arith.constant dense<0.000000e+00> : vector<4xf32>
    %86 = vector.multi_reduction <add>, %85, %cst_28 [1] : vector<4x32xf32> to vector<4xf32>
    %87 = vector.shape_cast %86 : vector<4xf32> to vector<4x1xf32>
    %88 = math.rsqrt %87 : vector<4x1xf32>
    %89 = vector.broadcast %88 : vector<4x1xf32> to vector<4x32xf32>
    %90 = arith.mulf %46, %89 : vector<4x32xf32>
    %91 = arith.mulf %78, %78 : vector<4x32xf32>
    %cst_29 = arith.constant dense<0.000000e+00> : vector<4xf32>
    %92 = vector.multi_reduction <add>, %91, %cst_29 [1] : vector<4x32xf32> to vector<4xf32>
    %93 = vector.shape_cast %92 : vector<4xf32> to vector<4x1xf32>
    %94 = math.rsqrt %93 : vector<4x1xf32>
    %95 = vector.broadcast %94 : vector<4x1xf32> to vector<4x32xf32>
    %96 = arith.mulf %78, %95 : vector<4x32xf32>
    %97 = arith.subf %84, %90 : vector<4x32xf32>
    %cst_30 = arith.constant 9.99999997E-7 : f32
    %98 = vector.broadcast %cst_30 : f32 to vector<4x32xf32>
    %99 = arith.addf %97, %98 : vector<4x32xf32>
    %100 = arith.mulf %99, %99 : vector<4x32xf32>
    %cst_31 = arith.constant dense<0.000000e+00> : vector<4xf32>
    %101 = vector.multi_reduction <add>, %100, %cst_31 [1] : vector<4x32xf32> to vector<4xf32>
    %102 = vector.shape_cast %101 : vector<4xf32> to vector<4x1xf32>
    %103 = math.sqrt %102 : vector<4x1xf32>
    %104 = arith.subf %84, %96 : vector<4x32xf32>
    %cst_32 = arith.constant 9.99999997E-7 : f32
    %105 = vector.broadcast %cst_32 : f32 to vector<4x32xf32>
    %106 = arith.addf %104, %105 : vector<4x32xf32>
    %107 = arith.mulf %106, %106 : vector<4x32xf32>
    %cst_33 = arith.constant dense<0.000000e+00> : vector<4xf32>
    %108 = vector.multi_reduction <add>, %107, %cst_33 [1] : vector<4x32xf32> to vector<4xf32>
    %109 = vector.shape_cast %108 : vector<4xf32> to vector<4x1xf32>
    %110 = math.sqrt %109 : vector<4x1xf32>
    %111 = arith.subf %110, %103 : vector<4x1xf32>
    %cst_34 = arith.constant 2.000000e-01 : f32
    %112 = vector.broadcast %cst_34 : f32 to vector<4x1xf32>
    %113 = arith.cmpf ogt, %111, %112 : vector<4x1xf32>
    %114 = arith.extui %113 : vector<4x1xi1> to vector<4x1xi32>
    %115 = vector.shape_cast %114 : vector<4x1xi32> to vector<1x4x1xi32>
    %cst_35 = arith.constant dense<0> : vector<1xi32>
    %116 = vector.multi_reduction <add>, %115, %cst_35 [1, 2] : vector<1x4x1xi32> to vector<1xi32>
    %117 = vector.shape_cast %116 : vector<1xi32> to vector<1x1x1xi32>
    %118 = vector.extract %117[0, 0, 0] : i32 from vector<1x1x1xi32>
    %c0_36 = arith.constant 0 : index
    %119 = memref.load %arg7[%c0_36] : memref<1xi32, #tpu.memory_space<smem>>
    memref.store %118, %arg7[%c0_36] : memref<1xi32, #tpu.memory_space<smem>>
    %cst_37 = arith.constant 0.000000e+00 : f32
    %120 = vector.broadcast %cst_37 : f32 to vector<4x32xf32>
    %121 = tpu.concatenate %84, %90, %96, %120 in 1 : vector<4x32xf32>, vector<4x32xf32>, vector<4x32xf32>, vector<4x32xf32> -> vector<4x128xf32>
    %c0_38 = arith.constant 0 : index
    %c0_39 = arith.constant 0 : index
    %122 = vector.load %arg6[%c0_38, %c0_39] : memref<4x128xf32, #tpu.memory_space<vmem>>, vector<4x128xf32>
    tpu.vector_store %arg6[%c0_38, %c0_39], %121 {strides = array<i32>} : memref<4x128xf32, #tpu.memory_space<vmem>>, vector<4x128xf32>,
    return
  }
}

</mosaic_0001>

<llo_original>
// kernel: tpu_custom_call.1
$region0: #{tpu_custom_call.1}
  #allocation0 [shape = 'u32[]', space=smem, size = 0x4, offset = 0x4, fixed_abs, tag = 'smem constant byte address 0x4 - core index']
  #allocation1 [shape = 'u32[144,128]{1,0:T(1,128)}', space=vmem, size = 0x12000, scoped, tag = 'internal scratch']
  %s0 = inlined_call_operand.vmem [shape: f32[4,768], index: 0, kind: input, shape index: {}]
  %s1 = inlined_call_operand.vmem [shape: f32[8,40], index: 1, kind: input, shape index: {}]
  %s2 = inlined_call_operand.vmem [shape: bf16[768,32], index: 2, kind: input, shape index: {}]
  %s3 = inlined_call_operand.vmem [shape: bf16[40,32], index: 3, kind: input, shape index: {}]
  %s4 = inlined_call_operand.vmem [shape: bf16[32,32], index: 4, kind: input, shape index: {}]
  %s5 = inlined_call_operand.vmem [shape: f32[5,32], index: 5, kind: input, shape index: {}]
  %s6 = inlined_call_operand.hbm [shape: f32[4,128], index: 6, kind: output, shape index: {0}]
  %s7 = inlined_call_operand.hbm [shape: s32[1], index: 7, kind: output, shape index: {1}]
  %8 = xla_tuple %s6, %s7
  %s9 = sld [smem:[#allocation0]]
  $region42: #{tpu_custom_call.1} parent=0
    _
  %s11 = ssub.s32 1, %s9
  %s12 = scalar_select 0, %s11, %s9
  $region1: #{tpu_custom_call.1} parent=0
    #allocation2 [shape = 'u8[2048]{0}', space=vmem, size = 0x800, scoped, tag = 'output window, operand 0, single buffered']
    #allocation3 [shape = 's32[1]{0}', space=sflag, size = 0x4, scoped, tag = 'scoped memory for tpu_custom_call.1']
    #allocation4 [shape = 's32[1]{0}', space=sflag, size = 0x4, scoped, tag = 'scoped memory for tpu_custom_call.1']
    #allocation5 [shape = 'u8[512]{0}', space=smem, size = 0x200, scoped, tag = 'output window, operand 1, single buffered']
    %13 = vsyncpa [#allocation3], 0
    %14 = vsyncpa [#allocation4], 0
    // Predicated region
    $region2: #{tpu_custom_call.1} parent=1 // pred_check
      _
    $region3: #{tpu_custom_call.1} parent=1 // pred_check_branch
      %16 = sbr.rel (0) target = $region5
    $region4: #{tpu_custom_call.1} parent=1 // pred_region
      _
    $region5: #{tpu_custom_call.1} parent=1 // pred_fallthru
      _
    // Predicated region
    $region6: #{tpu_custom_call.1} parent=1 // pred_check
      _
    $region7: #{tpu_custom_call.1} parent=1 // pred_check_branch
      %18 = sbr.rel (0) target = $region9
    $region8: #{tpu_custom_call.1} parent=1 // pred_region
      _
    $region9: #{tpu_custom_call.1} parent=1 // pred_fallthru
      _
    // Predicated region
    $region10: #{tpu_custom_call.1} parent=1 // pred_check
      _
    $region11: #{tpu_custom_call.1} parent=1 // pred_check_branch
      %20 = sbr.rel (0) target = $region13
    $region12: #{tpu_custom_call.1} parent=1 // pred_region
      _
    $region13: #{tpu_custom_call.1} parent=1 // pred_fallthru
      _
    // Predicated region
    $region14: #{tpu_custom_call.1} parent=1 // pred_check
      _
    $region15: #{tpu_custom_call.1} parent=1 // pred_check_branch
      %22 = sbr.rel (0) target = $region17
    $region16: #{tpu_custom_call.1} parent=1 // pred_region
      _
    $region17: #{tpu_custom_call.1} parent=1 // pred_fallthru
      _
    // Predicated region
    $region18: #{tpu_custom_call.1} parent=1 // pred_check
      _
    $region19: #{tpu_custom_call.1} parent=1 // pred_check_branch
      %24 = sbr.rel (0) target = $region21
    $region20: #{tpu_custom_call.1} parent=1 // pred_region
      _
    $region21: #{tpu_custom_call.1} parent=1 // pred_fallthru
      _
    // Predicated region
    $region22: #{tpu_custom_call.1} parent=1 // pred_check
      _
    $region23: #{tpu_custom_call.1} parent=1 // pred_check_branch
      %26 = sbr.rel (0) target = $region25
    $region24: #{tpu_custom_call.1} parent=1 // pred_region
      _
    $region25: #{tpu_custom_call.1} parent=1 // pred_fallthru
      _
    %v28 = vld [vmem:[%s5] sm:$0x1f]
    %v29 = vld [vmem:[%s0] sm:$0xff]
    %v30 = vld [vmem:[%s0 + $0x8] sm:$0xff]
    %v31 = vld [vmem:[%s0 + $0x10] sm:$0xff]
    %v35 = vcombine.high %v29, %v29
    %v36 = vcombine.high %v30, %v30
    %v37 = vcombine.high %v31, %v31
    %v41 = vpack.c.bf16 %v29, %v29
    %v42 = vpack.c.bf16 %v35, %v35
    %v43 = vpack.c.bf16 %v30, %v30
    %v44 = vpack.c.bf16 %v36, %v36
    %v45 = vpack.c.bf16 %v31, %v31
    %v46 = vpack.c.bf16 %v37, %v37
    %v47 = vld [vmem:[%s2] sm:$0xf]
    %v48 = vld [vmem:[%s2 + $0x4] sm:$0xf]
    %v49 = vld [vmem:[%s2 + $0x8] sm:$0xf]
    %v50 = vld [vmem:[%s2 + $0xc] sm:$0xf]
    %v51 = vld [vmem:[%s2 + $0x10] sm:$0xf]
    %v52 = vld [vmem:[%s2 + $0x14] sm:$0xf]
    %v53 = vld [vmem:[%s2 + $0x18] sm:$0xf]
    %v54 = vld [vmem:[%s2 + $0x1c] sm:$0xf]
    %v55 = vld [vmem:[%s2 + $0x20] sm:$0xf]
    %v56 = vld [vmem:[%s2 + $0x24] sm:$0xf]
    %v57 = vld [vmem:[%s2 + $0x28] sm:$0xf]
    %v58 = vld [vmem:[%s2 + $0x2c] sm:$0xf]
    %v59 = vld [vmem:[%s2 + $0x30] sm:$0xf]
    %v60 = vld [vmem:[%s2 + $0x34] sm:$0xf]
    %v61 = vld [vmem:[%s2 + $0x38] sm:$0xf]
    %v62 = vld [vmem:[%s2 + $0x3c] sm:$0xf]
    %v63 = vld [vmem:[%s2 + $0x40] sm:$0xf]
    %v64 = vld [vmem:[%s2 + $0x44] sm:$0xf]
    %v65 = vld [vmem:[%s2 + $0x48] sm:$0xf]
    %v66 = vld [vmem:[%s2 + $0x4c] sm:$0xf]
    %v67 = vld [vmem:[%s2 + $0x50] sm:$0xf]
    %v68 = vld [vmem:[%s2 + $0x54] sm:$0xf]
    %v69 = vld [vmem:[%s2 + $0x58] sm:$0xf]
    %v70 = vld [vmem:[%s2 + $0x5c] sm:$0xf]
    %v71 = vld [vmem:[%s2 + $0x60] sm:$0xf]
    %v72 = vld [vmem:[%s2 + $0x64] sm:$0xf]
    %v73 = vld [vmem:[%s2 + $0x68] sm:$0xf]
    %v74 = vld [vmem:[%s2 + $0x6c] sm:$0xf]
    %v75 = vld [vmem:[%s2 + $0x70] sm:$0xf]
    %v76 = vld [vmem:[%s2 + $0x74] sm:$0xf]
    %v77 = vld [vmem:[%s2 + $0x78] sm:$0xf]
    %v78 = vld [vmem:[%s2 + $0x7c] sm:$0xf]
    %v79 = vld [vmem:[%s2 + $0x80] sm:$0xf]
    %v80 = vld [vmem:[%s2 + $0x84] sm:$0xf]
    %v81 = vld [vmem:[%s2 + $0x88] sm:$0xf]
    %v82 = vld [vmem:[%s2 + $0x8c] sm:$0xf]
    %v83 = vld [vmem:[%s2 + $0x90] sm:$0xf]
    %v84 = vld [vmem:[%s2 + $0x94] sm:$0xf]
    %v85 = vld [vmem:[%s2 + $0x98] sm:$0xf]
    %v86 = vld [vmem:[%s2 + $0x9c] sm:$0xf]
    %v87 = vld [vmem:[%s2 + $0xa0] sm:$0xf]
    %v88 = vld [vmem:[%s2 + $0xa4] sm:$0xf]
    %v89 = vld [vmem:[%s2 + $0xa8] sm:$0xf]
    %v90 = vld [vmem:[%s2 + $0xac] sm:$0xf]
    %v91 = vld [vmem:[%s2 + $0xb0] sm:$0xf]
    %v92 = vld [vmem:[%s2 + $0xb4] sm:$0xf]
    %v93 = vld [vmem:[%s2 + $0xb8] sm:$0xf]
    %v94 = vld [vmem:[%s2 + $0xbc] sm:$0xf]
    %v95 = vld [vmem:[%s2 + $0xc0] sm:$0xf]
    %v96 = vld [vmem:[%s2 + $0xc4] sm:$0xf]
    %v97 = vld [vmem:[%s2 + $0xc8] sm:$0xf]
    %v98 = vld [vmem:[%s2 + $0xcc] sm:$0xf]
    %v99 = vld [vmem:[%s2 + $0xd0] sm:$0xf]
    %v100 = vld [vmem:[%s2 + $0xd4] sm:$0xf]
    %v101 = vld [vmem:[%s2 + $0xd8] sm:$0xf]
    %v102 = vld [vmem:[%s2 + $0xdc] sm:$0xf]
    %v103 = vld [vmem:[%s2 + $0xe0] sm:$0xf]
    %v104 = vld [vmem:[%s2 + $0xe4] sm:$0xf]
    %v105 = vld [vmem:[%s2 + $0xe8] sm:$0xf]
    %v106 = vld [vmem:[%s2 + $0xec] sm:$0xf]
    %v107 = vld [vmem:[%s2 + $0xf0] sm:$0xf]
    %v108 = vld [vmem:[%s2 + $0xf4] sm:$0xf]
    %v109 = vld [vmem:[%s2 + $0xf8] sm:$0xf]
    %v110 = vld [vmem:[%s2 + $0xfc] sm:$0xf]
    %v111 = vld [vmem:[%s2 + $0x100] sm:$0xf]
    %v112 = vld [vmem:[%s2 + $0x104] sm:$0xf]
    %v113 = vld [vmem:[%s2 + $0x108] sm:$0xf]
    %v114 = vld [vmem:[%s2 + $0x10c] sm:$0xf]
    %v115 = vld [vmem:[%s2 + $0x110] sm:$0xf]
    %v116 = vld [vmem:[%s2 + $0x114] sm:$0xf]
    %v117 = vld [vmem:[%s2 + $0x118] sm:$0xf]
    %v118 = vld [vmem:[%s2 + $0x11c] sm:$0xf]
    %v119 = vld [vmem:[%s2 + $0x120] sm:$0xf]
    %v120 = vld [vmem:[%s2 + $0x124] sm:$0xf]
    %v121 = vld [vmem:[%s2 + $0x128] sm:$0xf]
    %v122 = vld [vmem:[%s2 + $0x12c] sm:$0xf]
    %v123 = vld [vmem:[%s2 + $0x130] sm:$0xf]
    %v124 = vld [vmem:[%s2 + $0x134] sm:$0xf]
    %v125 = vld [vmem:[%s2 + $0x138] sm:$0xf]
    %v126 = vld [vmem:[%s2 + $0x13c] sm:$0xf]
    %v127 = vld [vmem:[%s2 + $0x140] sm:$0xf]
    %v128 = vld [vmem:[%s2 + $0x144] sm:$0xf]
    %v129 = vld [vmem:[%s2 + $0x148] sm:$0xf]
    %v130 = vld [vmem:[%s2 + $0x14c] sm:$0xf]
    %v131 = vld [vmem:[%s2 + $0x150] sm:$0xf]
    %v132 = vld [vmem:[%s2 + $0x154] sm:$0xf]
    %v133 = vld [vmem:[%s2 + $0x158] sm:$0xf]
    %v134 = vld [vmem:[%s2 + $0x15c] sm:$0xf]
    %v135 = vld [vmem:[%s2 + $0x160] sm:$0xf]
    %v136 = vld [vmem:[%s2 + $0x164] sm:$0xf]
    %v137 = vld [vmem:[%s2 + $0x168] sm:$0xf]
    %v138 = vld [vmem:[%s2 + $0x16c] sm:$0xf]
    %v139 = vld [vmem:[%s2 + $0x170] sm:$0xf]
    %v140 = vld [vmem:[%s2 + $0x174] sm:$0xf]
    %v141 = vld [vmem:[%s2 + $0x178] sm:$0xf]
    %v142 = vld [vmem:[%s2 + $0x17c] sm:$0xf]
    %v143 = vlaneseq
    %v144 = vshrl.u32 %v143, 7
    %v145 = vsub.s32 0, %v144
    %v146 = vrot.slane %v28, %v145
    %v243 = vunpack.c.l.b16 %v47
    %v244 = vunpack.c.l.b16 %v48
    %v245 = vunpack.c.l.b16 %v49
    %v246 = vunpack.c.l.b16 %v50
    %v247 = vunpack.c.l.b16 %v51
    %v248 = vunpack.c.l.b16 %v52
    %v249 = vunpack.c.l.b16 %v53
    %v250 = vunpack.c.l.b16 %v54
    %v251 = vunpack.c.l.b16 %v55
    %v252 = vunpack.c.l.b16 %v56
    %v253 = vunpack.c.l.b16 %v57
    %v254 = vunpack.c.l.b16 %v58
    %v255 = vunpack.c.l.b16 %v59
    %v256 = vunpack.c.l.b16 %v60
    %v257 = vunpack.c.l.b16 %v61
    %v258 = vunpack.c.l.b16 %v62
    %v259 = vunpack.c.l.b16 %v63
    %v260 = vunpack.c.l.b16 %v64
    %v261 = vunpack.c.l.b16 %v65
    %v262 = vunpack.c.l.b16 %v66
    %v263 = vunpack.c.l.b16 %v67
    %v264 = vunpack.c.l.b16 %v68
    %v265 = vunpack.c.l.b16 %v69
    %v266 = vunpack.c.l.b16 %v70
    %v267 = vunpack.c.l.b16 %v71
    %v268 = vunpack.c.l.b16 %v72
    %v269 = vunpack.c.l.b16 %v73
    %v270 = vunpack.c.l.b16 %v74
    %v271 = vunpack.c.l.b16 %v75
    %v272 = vunpack.c.l.b16 %v76
    %v273 = vunpack.c.l.b16 %v77
    %v274 = vunpack.c.l.b16 %v78
    %v275 = vunpack.c.l.b16 %v79
    %v276 = vunpack.c.l.b16 %v80
    %v277 = vunpack.c.l.b16 %v81
    %v278 = vunpack.c.l.b16 %v82
    %v279 = vunpack.c.l.b16 %v83
    %v280 = vunpack.c.l.b16 %v84
    %v281 = vunpack.c.l.b16 %v85
    %v282 = vunpack.c.l.b16 %v86
    %v283 = vunpack.c.l.b16 %v87
    %v284 = vunpack.c.l.b16 %v88
    %v285 = vunpack.c.l.b16 %v89
    %v286 = vunpack.c.l.b16 %v90
    %v287 = vunpack.c.l.b16 %v91
    %v288 = vunpack.c.l.b16 %v92
    %v289 = vunpack.c.l.b16 %v93
    %v290 = vunpack.c.l.b16 %v94
    %v291 = vunpack.c.l.b16 %v95
    %v292 = vunpack.c.l.b16 %v96
    %v293 = vunpack.c.l.b16 %v97
    %v294 = vunpack.c.l.b16 %v98
    %v295 = vunpack.c.l.b16 %v99
    %v296 = vunpack.c.l.b16 %v100
    %v297 = vunpack.c.l.b16 %v101
    %v298 = vunpack.c.l.b16 %v102
    %v299 = vunpack.c.l.b16 %v103
    %v300 = vunpack.c.l.b16 %v104
    %v301 = vunpack.c.l.b16 %v105
    %v302 = vunpack.c.l.b16 %v106
    %v303 = vunpack.c.l.b16 %v107
    %v304 = vunpack.c.l.b16 %v108
    %v305 = vunpack.c.l.b16 %v109
    %v306 = vunpack.c.l.b16 %v110
    %v307 = vunpack.c.l.b16 %v111
    %v308 = vunpack.c.l.b16 %v112
    %v309 = vunpack.c.l.b16 %v113
    %v310 = vunpack.c.l.b16 %v114
    %v311 = vunpack.c.l.b16 %v115
    %v312 = vunpack.c.l.b16 %v116
    %v313 = vunpack.c.l.b16 %v117
    %v314 = vunpack.c.l.b16 %v118
    %v315 = vunpack.c.l.b16 %v119
    %v316 = vunpack.c.l.b16 %v120
    %v317 = vunpack.c.l.b16 %v121
    %v318 = vunpack.c.l.b16 %v122
    %v319 = vunpack.c.l.b16 %v123
    %v320 = vunpack.c.l.b16 %v124
    %v321 = vunpack.c.l.b16 %v125
    %v322 = vunpack.c.l.b16 %v126
    %v323 = vunpack.c.l.b16 %v127
    %v324 = vunpack.c.l.b16 %v128
    %v325 = vunpack.c.l.b16 %v129
    %v326 = vunpack.c.l.b16 %v130
    %v327 = vunpack.c.l.b16 %v131
    %v328 = vunpack.c.l.b16 %v132
    %v329 = vunpack.c.l.b16 %v133
    %v330 = vunpack.c.l.b16 %v134
    %v331 = vunpack.c.l.b16 %v135
    %v332 = vunpack.c.l.b16 %v136
    %v333 = vunpack.c.l.b16 %v137
    %v334 = vunpack.c.l.b16 %v138
    %v335 = vunpack.c.l.b16 %v139
    %v336 = vunpack.c.l.b16 %v140
    %v337 = vunpack.c.l.b16 %v141
    %v338 = vunpack.c.l.b16 %v142
    %v339 = vpack.c.b16 %v244, %v243
    %v340 = vpack.c.b16 %v246, %v245
    %v341 = vpack.c.b16 %v248, %v247
    %v342 = vpack.c.b16 %v250, %v249
    %v343 = vpack.c.b16 %v252, %v251
    %v344 = vpack.c.b16 %v254, %v253
    %v345 = vpack.c.b16 %v256, %v255
    %v346 = vpack.c.b16 %v258, %v257
    %v347 = vpack.c.b16 %v260, %v259
    %v348 = vpack.c.b16 %v262, %v261
    %v349 = vpack.c.b16 %v264, %v263
    %v350 = vpack.c.b16 %v266, %v265
    %v351 = vpack.c.b16 %v268, %v267
    %v352 = vpack.c.b16 %v270, %v269
    %v353 = vpack.c.b16 %v272, %v271
    %v354 = vpack.c.b16 %v274, %v273
    %v355 = vpack.c.b16 %v276, %v275
    %v356 = vpack.c.b16 %v278, %v277
    %v357 = vpack.c.b16 %v280, %v279
    %v358 = vpack.c.b16 %v282, %v281
    %v359 = vpack.c.b16 %v284, %v283
    %v360 = vpack.c.b16 %v286, %v285
    %v361 = vpack.c.b16 %v288, %v287
    %v362 = vpack.c.b16 %v290, %v289
    %v363 = vpack.c.b16 %v292, %v291
    %v364 = vpack.c.b16 %v294, %v293
    %v365 = vpack.c.b16 %v296, %v295
    %v366 = vpack.c.b16 %v298, %v297
    %v367 = vpack.c.b16 %v300, %v299
    %v368 = vpack.c.b16 %v302, %v301
    %v369 = vpack.c.b16 %v304, %v303
    %v370 = vpack.c.b16 %v306, %v305
    %v371 = vpack.c.b16 %v308, %v307
    %v372 = vpack.c.b16 %v310, %v309
    %v373 = vpack.c.b16 %v312, %v311
    %v374 = vpack.c.b16 %v314, %v313
    %v375 = vpack.c.b16 %v316, %v315
    %v376 = vpack.c.b16 %v318, %v317
    %v377 = vpack.c.b16 %v320, %v319
    %v378 = vpack.c.b16 %v322, %v321
    %v379 = vpack.c.b16 %v324, %v323
    %v380 = vpack.c.b16 %v326, %v325
    %v381 = vpack.c.b16 %v328, %v327
    %v382 = vpack.c.b16 %v330, %v329
    %v383 = vpack.c.b16 %v332, %v331
    %v384 = vpack.c.b16 %v334, %v333
    %v385 = vpack.c.b16 %v336, %v335
    %v386 = vpack.c.b16 %v338, %v337
    %435 = vmatprep.subr.bf16.mxu0 0
    %436 = vmatpush1.bf16.msra.mxu0 %v339
    %437 = vmatprep.subr.bf16.mxu0 0
    %438 = vmatpush1.bf16.msra.mxu0 %v340
    %439 = vmatprep.subr.bf16.mxu0 0
    %440 = vmatpush1.bf16.msra.mxu0 %v341
    %441 = vmatprep.subr.bf16.mxu0 0
    %442 = vmatpush1.bf16.msra.mxu0 %v342
    %443 = vmatprep.subr.bf16.mxu0 0
    %444 = vmatpush1.bf16.msra.mxu0 %v343
    %445 = vmatprep.subr.bf16.mxu0 0
    %446 = vmatpush1.bf16.msra.mxu0 %v344
    %447 = vmatprep.subr.bf16.mxu0 0
    %448 = vmatpush1.bf16.msra.mxu0 %v345
    %449 = vmatprep.subr.bf16.mxu0 0
    %450 = vmatpush1.bf16.msra.mxu0 %v346
    %451 = vmatprep.subr.bf16.mxu0 0
    %452 = vmatpush1.bf16.msra.mxu0 %v347
    %453 = vmatprep.subr.bf16.mxu0 0
    %454 = vmatpush1.bf16.msra.mxu0 %v348
    %455 = vmatprep.subr.bf16.mxu0 0
    %456 = vmatpush1.bf16.msra.mxu0 %v349
    %457 = vmatprep.subr.bf16.mxu0 0
    %458 = vmatpush1.bf16.msra.mxu0 %v350
    %459 = vmatprep.subr.bf16.mxu0 0
    %460 = vmatpush1.bf16.msra.mxu0 %v351
    %461 = vmatprep.subr.bf16.mxu0 0
    %462 = vmatpush1.bf16.msra.mxu0 %v352
    %463 = vmatprep.subr.bf16.mxu0 0
    %464 = vmatpush1.bf16.msra.mxu0 %v353
    %465 = vmatprep.subr.bf16.mxu0 0
    %466 = vmatpush1.bf16.msra.mxu0 %v354
    %467 = vmatprep.mubr.bf16.mxu0 %v42
    %468 = vmatmul.mubr.bf16.gmra.mrb[0].mxu0 %v41
    %v469 = vpop.f32.mrb[0].mxu0
    %v470 = vadd.f32 %v146, %v469
    %v471 = vpop.f32.mrb[0].mxu0
    %v472 = vpop.f32.mrb[0].mxu0
    %v473 = vpop.f32.mrb[0].mxu0
    %474 = vdwg.mxu0
    %475 = vmatprep.subr.bf16.mxu0 0
    %476 = vmatpush1.bf16.msra.mxu0 %v355
    %477 = vmatprep.subr.bf16.mxu0 0
    %478 = vmatpush1.bf16.msra.mxu0 %v356
    %479 = vmatprep.subr.bf16.mxu0 0
    %480 = vmatpush1.bf16.msra.mxu0 %v357
    %481 = vmatprep.subr.bf16.mxu0 0
    %482 = vmatpush1.bf16.msra.mxu0 %v358
    %483 = vmatprep.subr.bf16.mxu0 0
    %484 = vmatpush1.bf16.msra.mxu0 %v359
    %485 = vmatprep.subr.bf16.mxu0 0
    %486 = vmatpush1.bf16.msra.mxu0 %v360
    %487 = vmatprep.subr.bf16.mxu0 0
    %488 = vmatpush1.bf16.msra.mxu0 %v361
    %489 = vmatprep.subr.bf16.mxu0 0
    %490 = vmatpush1.bf16.msra.mxu0 %v362
    %491 = vmatprep.subr.bf16.mxu0 0
    %492 = vmatpush1.bf16.msra.mxu0 %v363
    %493 = vmatprep.subr.bf16.mxu0 0
    %494 = vmatpush1.bf16.msra.mxu0 %v364
    %495 = vmatprep.subr.bf16.mxu0 0
    %496 = vmatpush1.bf16.msra.mxu0 %v365
    %497 = vmatprep.subr.bf16.mxu0 0
    %498 = vmatpush1.bf16.msra.mxu0 %v366
    %499 = vmatprep.subr.bf16.mxu0 0
    %500 = vmatpush1.bf16.msra.mxu0 %v367
    %501 = vmatprep.subr.bf16.mxu0 0
    %502 = vmatpush1.bf16.msra.mxu0 %v368
    %503 = vmatprep.subr.bf16.mxu0 0
    %504 = vmatpush1.bf16.msra.mxu0 %v369
    %505 = vmatprep.subr.bf16.mxu0 0
    %506 = vmatpush1.bf16.msra.mxu0 %v370
    %507 = vmatprep.mubr.bf16.mxu0 %v44
    %508 = vmatmul.mubr.bf16.gmra.mrb[0].mxu0 %v43
    %v509 = vpop.f32.mrb[0].mxu0
    %v510 = vadd.f32 %v470, %v509
    %v511 = vpop.f32.mrb[0].mxu0
    %v512 = vpop.f32.mrb[0].mxu0
    %v513 = vpop.f32.mrb[0].mxu0
    %514 = vdwg.mxu0
    %515 = vmatprep.subr.bf16.mxu0 0
    %516 = vmatpush1.bf16.msra.mxu0 %v371
    %517 = vmatprep.subr.bf16.mxu0 0
    %518 = vmatpush1.bf16.msra.mxu0 %v372
    %519 = vmatprep.subr.bf16.mxu0 0
    %520 = vmatpush1.bf16.msra.mxu0 %v373
    %521 = vmatprep.subr.bf16.mxu0 0
    %522 = vmatpush1.bf16.msra.mxu0 %v374
    %523 = vmatprep.subr.bf16.mxu0 0
    %524 = vmatpush1.bf16.msra.mxu0 %v375
    %525 = vmatprep.subr.bf16.mxu0 0
    %526 = vmatpush1.bf16.msra.mxu0 %v376
    %527 = vmatprep.subr.bf16.mxu0 0
    %528 = vmatpush1.bf16.msra.mxu0 %v377
    %529 = vmatprep.subr.bf16.mxu0 0
    %530 = vmatpush1.bf16.msra.mxu0 %v378
    %531 = vmatprep.subr.bf16.mxu0 0
    %532 = vmatpush1.bf16.msra.mxu0 %v379
    %533 = vmatprep.subr.bf16.mxu0 0
    %534 = vmatpush1.bf16.msra.mxu0 %v380
    %535 = vmatprep.subr.bf16.mxu0 0
    %536 = vmatpush1.bf16.msra.mxu0 %v381
    %537 = vmatprep.subr.bf16.mxu0 0
    %538 = vmatpush1.bf16.msra.mxu0 %v382
    %539 = vmatprep.subr.bf16.mxu0 0
    %540 = vmatpush1.bf16.msra.mxu0 %v383
    %541 = vmatprep.subr.bf16.mxu0 0
    %542 = vmatpush1.bf16.msra.mxu0 %v384
    %543 = vmatprep.subr.bf16.mxu0 0
    %544 = vmatpush1.bf16.msra.mxu0 %v385
    %545 = vmatprep.subr.bf16.mxu0 0
    %546 = vmatpush1.bf16.msra.mxu0 %v386
    %547 = vmatprep.mubr.bf16.mxu0 %v46
    %548 = vmatmul.mubr.bf16.gmra.mrb[0].mxu0 %v45
    %v549 = vpop.f32.mrb[0].mxu0
    %v550 = vadd.f32 %v510, %v549
    %v551 = vpop.f32.mrb[0].mxu0
    %v552 = vpop.f32.mrb[0].mxu0
    %v553 = vpop.f32.mrb[0].mxu0
    %554 = vdwg.mxu0
    %v555 = vld [vmem:[%s3] sm:$0xf]
    %v556 = vld [vmem:[%s3 + $0x4] sm:$0xf]
    %v557 = vld [vmem:[%s3 + $0x8] sm:$0xf]
    %v558 = vld [vmem:[%s3 + $0xc] sm:$0xf]
    %v559 = vld [vmem:[%s3 + $0x10] sm:$0xf]
    %v560 = vld [vmem:[%s4] sm:$0xf]
    %v561 = vld [vmem:[%s4 + $0x4] sm:$0xf]
    %v562 = vld [vmem:[%s4 + $0x8] sm:$0xf]
    %v563 = vld [vmem:[%s4 + $0xc] sm:$0xf]
    %v564 = vld [vmem:[%s1] sm:$0xff]
    %v565 = vpack.c.bf16 %v564, %v564
    %v566 = vlaneseq
    %v567 = vshrl.u32 %v566, 7
    %v568 = vsub.s32 1, %v567
    %v569 = vrot.slane %v28, %v568
    %v575 = vunpack.c.l.b16 %v555
    %v576 = vunpack.c.l.b16 %v556
    %v577 = vunpack.c.l.b16 %v557
    %v578 = vunpack.c.l.b16 %v558
    %v579 = vunpack.c.l.b16 %v559
    %v580 = vpack.c.b16 %v576, %v575
    %v581 = vpack.c.b16 %v578, %v577
    %v582 = vpack.c.b16 %v579, %v579
    %vm585 = vcmask 326656
    %v587 = vsel %vm585, %v565, 0
    %vm589 = vcmask 1043456
    %v591 = vsel %vm589, %v582, 0
    %593 = vmatprep.subr.bf16.mxu0 0
    %594 = vmatpush1.bf16.msra.mxu0 %v580
    %595 = vmatprep.subr.bf16.mxu0 0
    %596 = vmatpush1.bf16.msra.mxu0 %v581
    %597 = vmatprep.subr.bf16.mxu0 0
    %598 = vmatpush1.bf16.msra.mxu0 %v591
    %599 = vmatprep.subr.bf16.mxu0 0
    %600 = vmatpush1.bf16.msra.mxu0 0
    %601 = vmatprep.subr.bf16.mxu0 0
    %602 = vmatpush1.bf16.msra.mxu0 0
    %603 = vmatprep.subr.bf16.mxu0 0
    %604 = vmatpush1.bf16.msra.mxu0 0
    %605 = vmatprep.subr.bf16.mxu0 0
    %606 = vmatpush1.bf16.msra.mxu0 0
    %607 = vmatprep.subr.bf16.mxu0 0
    %608 = vmatpush1.bf16.msra.mxu0 0
    %609 = vmatprep.subr.bf16.mxu0 0
    %610 = vmatpush1.bf16.msra.mxu0 0
    %611 = vmatprep.subr.bf16.mxu0 0
    %612 = vmatpush1.bf16.msra.mxu0 0
    %613 = vmatprep.subr.bf16.mxu0 0
    %614 = vmatpush1.bf16.msra.mxu0 0
    %615 = vmatprep.subr.bf16.mxu0 0
    %616 = vmatpush1.bf16.msra.mxu0 0
    %617 = vmatprep.subr.bf16.mxu0 0
    %618 = vmatpush1.bf16.msra.mxu0 0
    %619 = vmatprep.subr.bf16.mxu0 0
    %620 = vmatpush1.bf16.msra.mxu0 0
    %621 = vmatprep.subr.bf16.mxu0 0
    %622 = vmatpush1.bf16.msra.mxu0 0
    %623 = vmatprep.subr.bf16.mxu0 0
    %624 = vmatpush1.bf16.msra.mxu0 0
    %625 = vmatprep.mubr.bf16.mxu0 0
    %626 = vmatmul.mubr.bf16.gmra.mrb[0].mxu0 %v587
    %v627 = vpop.f32.mrb[0].mxu0
    %v628 = vadd.f32 %v569, %v627
    %v629 = vpop.f32.mrb[0].mxu0
    %v630 = vpop.f32.mrb[0].mxu0
    %v631 = vpop.f32.mrb[0].mxu0
    %632 = vdwg.mxu0
    %vm633 = vcmask 257024
    %v634 = vsel %vm633, %v628, 0.0
    %v635 = vrot.slane %v634, 4
    %v636 = vadd.f32 %v634, %v635
    %v637 = vrot.slane %v636, 2
    %v638 = vadd.f32 %v636, %v637
    %v639 = vrot.slane %v638, 1
    %v640 = vadd.f32 %v638, %v639
    %v641 = vrcp.pop 4.0
    %v642 = vmul.f32 %v640, %v641
    %v643 = vmul.f32 %v628, %v628
    %v644 = vsel %vm633, %v643, 0.0
    %v645 = vrot.slane %v644, 4
    %v646 = vadd.f32 %v644, %v645
    %v647 = vrot.slane %v646, 2
    %v648 = vadd.f32 %v646, %v647
    %v649 = vrot.slane %v648, 1
    %v650 = vadd.f32 %v648, %v649
    %v651 = vmul.f32 %v650, %v641
    %v652 = vmul.f32 %v642, %v642
    %v653 = vsub.f32 %v651, %v652
    %v654 = vadd.f32 %v653, 0.001
    %v655 = vrsqrt.pop %v654
    %v656 = vmul.f32 %v28, %v655
    %v657 = vmul.f32 %v642, %v656
    %v659 = vrot.slane %v657, 7
    %v661 = vsub.f32 %v28, %v659
    %v662 = vlaneseq
    %v663 = vshrl.u32 %v662, 7
    %v664 = vsub.s32 2, %v663
    %v665 = vrot.slane %v656, %v664
    %v666 = vmul.f32 %v628, %v665
    %v667 = vlaneseq
    %v668 = vshrl.u32 %v667, 7
    %v669 = vsub.s32 3, %v668
    %v670 = vrot.slane %v661, %v669
    %v671 = vadd.f32 %v666, %v670
    %v672 = vmax.f32 %v671, 0.0
    %v673 = vpack.c.bf16 %v672, %v672
    %v674 = vlaneseq
    %v675 = vshrl.u32 %v674, 7
    %v676 = vsub.s32 4, %v675
    %v677 = vrot.slane %v28, %v676
    %v682 = vunpack.c.l.b16 %v560
    %v683 = vunpack.c.l.b16 %v561
    %v684 = vunpack.c.l.b16 %v562
    %v685 = vunpack.c.l.b16 %v563
    %v686 = vpack.c.b16 %v683, %v682
    %v687 = vpack.c.b16 %v685, %v684
    %vm690 = vcmask 261120
    %v692 = vsel %vm690, %v673, 0
    %694 = vmatprep.subr.bf16.mxu0 0
    %695 = vmatpush1.bf16.msra.mxu0 %v686
    %696 = vmatprep.subr.bf16.mxu0 0
    %697 = vmatpush1.bf16.msra.mxu0 %v687
    %698 = vmatprep.subr.bf16.mxu0 0
    %699 = vmatpush1.bf16.msra.mxu0 0
    %700 = vmatprep.subr.bf16.mxu0 0
    %701 = vmatpush1.bf16.msra.mxu0 0
    %702 = vmatprep.subr.bf16.mxu0 0
    %703 = vmatpush1.bf16.msra.mxu0 0
    %704 = vmatprep.subr.bf16.mxu0 0
    %705 = vmatpush1.bf16.msra.mxu0 0
    %706 = vmatprep.subr.bf16.mxu0 0
    %707 = vmatpush1.bf16.msra.mxu0 0
    %708 = vmatprep.subr.bf16.mxu0 0
    %709 = vmatpush1.bf16.msra.mxu0 0
    %710 = vmatprep.subr.bf16.mxu0 0
    %711 = vmatpush1.bf16.msra.mxu0 0
    %712 = vmatprep.subr.bf16.mxu0 0
    %713 = vmatpush1.bf16.msra.mxu0 0
    %714 = vmatprep.subr.bf16.mxu0 0
    %715 = vmatpush1.bf16.msra.mxu0 0
    %716 = vmatprep.subr.bf16.mxu0 0
    %717 = vmatpush1.bf16.msra.mxu0 0
    %718 = vmatprep.subr.bf16.mxu0 0
    %719 = vmatpush1.bf16.msra.mxu0 0
    %720 = vmatprep.subr.bf16.mxu0 0
    %721 = vmatpush1.bf16.msra.mxu0 0
    %722 = vmatprep.subr.bf16.mxu0 0
    %723 = vmatpush1.bf16.msra.mxu0 0
    %724 = vmatprep.subr.bf16.mxu0 0
    %725 = vmatpush1.bf16.msra.mxu0 0
    %726 = vmatprep.mubr.bf16.mxu0 0
    %727 = vmatmul.mubr.bf16.gmra.mrb[0].mxu0 %v692
    %v728 = vpop.f32.mrb[0].mxu0
    %v729 = vadd.f32 %v677, %v728
    %v730 = vpop.f32.mrb[0].mxu0
    %v731 = vpop.f32.mrb[0].mxu0
    %v732 = vpop.f32.mrb[0].mxu0
    %733 = vdwg.mxu0
    %v735 = vrot.slane %v565, 2
    %v737 = vsel %vm585, %v735, 0
    %739 = vmatprep.subr.bf16.mxu0 0
    %740 = vmatpush1.bf16.msra.mxu0 %v580
    %741 = vmatprep.subr.bf16.mxu0 0
    %742 = vmatpush1.bf16.msra.mxu0 %v581
    %743 = vmatprep.subr.bf16.mxu0 0
    %744 = vmatpush1.bf16.msra.mxu0 %v591
    %745 = vmatprep.subr.bf16.mxu0 0
    %746 = vmatpush1.bf16.msra.mxu0 0
    %747 = vmatprep.subr.bf16.mxu0 0
    %748 = vmatpush1.bf16.msra.mxu0 0
    %749 = vmatprep.subr.bf16.mxu0 0
    %750 = vmatpush1.bf16.msra.mxu0 0
    %751 = vmatprep.subr.bf16.mxu0 0
    %752 = vmatpush1.bf16.msra.mxu0 0
    %753 = vmatprep.subr.bf16.mxu0 0
    %754 = vmatpush1.bf16.msra.mxu0 0
    %755 = vmatprep.subr.bf16.mxu0 0
    %756 = vmatpush1.bf16.msra.mxu0 0
    %757 = vmatprep.subr.bf16.mxu0 0
    %758 = vmatpush1.bf16.msra.mxu0 0
    %759 = vmatprep.subr.bf16.mxu0 0
    %760 = vmatpush1.bf16.msra.mxu0 0
    %761 = vmatprep.subr.bf16.mxu0 0
    %762 = vmatpush1.bf16.msra.mxu0 0
    %763 = vmatprep.subr.bf16.mxu0 0
    %764 = vmatpush1.bf16.msra.mxu0 0
    %765 = vmatprep.subr.bf16.mxu0 0
    %766 = vmatpush1.bf16.msra.mxu0 0
    %767 = vmatprep.subr.bf16.mxu0 0
    %768 = vmatpush1.bf16.msra.mxu0 0
    %769 = vmatprep.subr.bf16.mxu0 0
    %770 = vmatpush1.bf16.msra.mxu0 0
    %771 = vmatprep.mubr.bf16.mxu0 0
    %772 = vmatmul.mubr.bf16.gmra.mrb[0].mxu0 %v737
    %v773 = vpop.f32.mrb[0].mxu0
    %v774 = vadd.f32 %v569, %v773
    %v775 = vpop.f32.mrb[0].mxu0
    %v776 = vpop.f32.mrb[0].mxu0
    %v777 = vpop.f32.mrb[0].mxu0
    %778 = vdwg.mxu0
    %v779 = vsel %vm633, %v774, 0.0
    %v780 = vrot.slane %v779, 4
    %v781 = vadd.f32 %v779, %v780
    %v782 = vrot.slane %v781, 2
    %v783 = vadd.f32 %v781, %v782
    %v784 = vrot.slane %v783, 1
    %v785 = vadd.f32 %v783, %v784
    %v786 = vmul.f32 %v785, %v641
    %v787 = vmul.f32 %v774, %v774
    %v788 = vsel %vm633, %v787, 0.0
    %v789 = vrot.slane %v788, 4
    %v790 = vadd.f32 %v788, %v789
    %v791 = vrot.slane %v790, 2
    %v792 = vadd.f32 %v790, %v791
    %v793 = vrot.slane %v792, 1
    %v794 = vadd.f32 %v792, %v793
    %v795 = vmul.f32 %v794, %v641
    %v796 = vmul.f32 %v786, %v786
    %v797 = vsub.f32 %v795, %v796
    %v798 = vadd.f32 %v797, 0.001
    %v799 = vrsqrt.pop %v798
    %v800 = vmul.f32 %v28, %v799
    %v801 = vmul.f32 %v786, %v800
    %v803 = vrot.slane %v801, 7
    %v805 = vsub.f32 %v28, %v803
    %v806 = vlaneseq
    %v807 = vshrl.u32 %v806, 7
    %v808 = vsub.s32 2, %v807
    %v809 = vrot.slane %v800, %v808
    %v810 = vmul.f32 %v774, %v809
    %v811 = vlaneseq
    %v812 = vshrl.u32 %v811, 7
    %v813 = vsub.s32 3, %v812
    %v814 = vrot.slane %v805, %v813
    %v815 = vadd.f32 %v810, %v814
    %v816 = vmax.f32 %v815, 0.0
    %v817 = vpack.c.bf16 %v816, %v816
    %v819 = vsel %vm690, %v817, 0
    %821 = vmatprep.subr.bf16.mxu0 0
    %822 = vmatpush1.bf16.msra.mxu0 %v686
    %823 = vmatprep.subr.bf16.mxu0 0
    %824 = vmatpush1.bf16.msra.mxu0 %v687
    %825 = vmatprep.subr.bf16.mxu0 0
    %826 = vmatpush1.bf16.msra.mxu0 0
    %827 = vmatprep.subr.bf16.mxu0 0
    %828 = vmatpush1.bf16.msra.mxu0 0
    %829 = vmatprep.subr.bf16.mxu0 0
    %830 = vmatpush1.bf16.msra.mxu0 0
    %831 = vmatprep.subr.bf16.mxu0 0
    %832 = vmatpush1.bf16.msra.mxu0 0
    %833 = vmatprep.subr.bf16.mxu0 0
    %834 = vmatpush1.bf16.msra.mxu0 0
    %835 = vmatprep.subr.bf16.mxu0 0
    %836 = vmatpush1.bf16.msra.mxu0 0
    %837 = vmatprep.subr.bf16.mxu0 0
    %838 = vmatpush1.bf16.msra.mxu0 0
    %839 = vmatprep.subr.bf16.mxu0 0
    %840 = vmatpush1.bf16.msra.mxu0 0
    %841 = vmatprep.subr.bf16.mxu0 0
    %842 = vmatpush1.bf16.msra.mxu0 0
    %843 = vmatprep.subr.bf16.mxu0 0
    %844 = vmatpush1.bf16.msra.mxu0 0
    %845 = vmatprep.subr.bf16.mxu0 0
    %846 = vmatpush1.bf16.msra.mxu0 0
    %847 = vmatprep.subr.bf16.mxu0 0
    %848 = vmatpush1.bf16.msra.mxu0 0
    %849 = vmatprep.subr.bf16.mxu0 0
    %850 = vmatpush1.bf16.msra.mxu0 0
    %851 = vmatprep.subr.bf16.mxu0 0
    %852 = vmatpush1.bf16.msra.mxu0 0
    %853 = vmatprep.mubr.bf16.mxu0 0
    %854 = vmatmul.mubr.bf16.gmra.mrb[0].mxu0 %v819
    %v855 = vpop.f32.mrb[0].mxu0
    %v856 = vadd.f32 %v677, %v855
    %v857 = vpop.f32.mrb[0].mxu0
    %v858 = vpop.f32.mrb[0].mxu0
    %v859 = vpop.f32.mrb[0].mxu0
    %860 = vdwg.mxu0
    %v861 = vmul.f32 %v550, %v550
    %v862 = vsel %vm633, %v861, 0.0
    %863 = vadd.xlane.f32.xlu0 %v862
    %v864 = vpop.xlane.xlu0 %863
    %v865 = vrsqrt.pop %v864
    %v866 = vmul.f32 %v550, %v865
    %v867 = vmul.f32 %v729, %v729
    %v868 = vsel %vm633, %v867, 0.0
    %869 = vadd.xlane.f32.xlu0 %v868
    %v870 = vpop.xlane.xlu0 %869
    %v871 = vrsqrt.pop %v870
    %v872 = vmul.f32 %v729, %v871
    %v873 = vmul.f32 %v856, %v856
    %v874 = vsel %vm633, %v873, 0.0
    %875 = vadd.xlane.f32.xlu0 %v874
    %v876 = vpop.xlane.xlu0 %875
    %v877 = vrsqrt.pop %v876
    %v878 = vmul.f32 %v856, %v877
    %v879 = vsub.f32 %v866, %v872
    %v880 = vadd.f32 %v879, 1e-06
    %v881 = vmul.f32 %v880, %v880
    %v882 = vsel %vm633, %v881, 0.0
    %883 = vadd.xlane.f32.xlu0 %v882
    %v884 = vpop.xlane.xlu0 %883
    %v885 = vrsqrt.pop %v884
    %v886 = vmul.f32 %v884, %v885
    %vm887 = vcmp.eq.f32.partialorder %v884, inf
    %v888 = vsel %vm887, %v884, %v886
    %vm889 = vcmp.eq.f32.partialorder %v884, 0.0
    %v890 = vand.u32 %v884, 2147483648
    %v891 = vsel %vm889, %v890, %v888
    %v892 = vsub.f32 %v866, %v878
    %v893 = vadd.f32 %v892, 1e-06
    %v894 = vmul.f32 %v893, %v893
    %v895 = vsel %vm633, %v894, 0.0
    %896 = vadd.xlane.f32.xlu0 %v895
    %v897 = vpop.xlane.xlu0 %896
    %v898 = vrsqrt.pop %v897
    %v899 = vmul.f32 %v897, %v898
    %vm900 = vcmp.eq.f32.partialorder %v897, inf
    %v901 = vsel %vm900, %v897, %v899
    %vm902 = vcmp.eq.f32.partialorder %v897, 0.0
    %v903 = vand.u32 %v897, 2147483648
    %v904 = vsel %vm902, %v903, %v901
    %v905 = vsub.f32 %v904, %v891
    %vm906 = vcmp.gt.f32.partialorder %v905, 0.2
    %v907 = vsel %vm906, 1, 0
    %v908 = vsel %vm589, %v907, 0
    %v909 = vrot.slane %v908, 4
    %v910 = vadd.s32 %v908, %v909
    %v911 = vrot.slane %v910, 2
    %v912 = vadd.s32 %v910, %v911
    %v913 = vrot.slane %v912, 1
    %v914 = vadd.s32 %v912, %v913
    %s915 = vtos %v914
    %s916 = scalar_lea.smem [#allocation5], 0
    %917 = sst [smem:[%s916]] %s915
    %919 = vrot.lane.b32.xlu0 %v872, 32
    %v920 = vpop.permute.xlu0 %919
    %923 = vrot.lane.b32.xlu0 %v878, 64
    %v924 = vpop.permute.xlu0 %923
    %v926 = vsel %vm690, %v866, %v920
    %vm927 = vcmask 523264
    %v928 = vsel %vm927, %v926, %v924
    %vm929 = vcmask 785408
    %v930 = vsel %vm929, %v928, 0.0
    %931 = vst [vmem:[#allocation2] sm:$0xf] %v930
    // Predicated region
    $region26: #{tpu_custom_call.1} parent=1 // pred_check
      _
    $region27: #{tpu_custom_call.1} parent=1 // pred_check_branch
      %933 = sbr.rel (0) target = $region29
    $region28: #{tpu_custom_call.1} parent=1 // pred_region
      %s935 = ssub.s32 64, 64
      %936 = vsyncadd [#allocation3], %s935
      %s938 = sshll.u32 [#allocation2], 4
      %s939 = int_to_ptr.vmem [resolvable:$true] %s938
      %941 = dma.vmem_to_hbm [thread:$0]  %s939, 64, %s6, [#allocation3]
    $region29: #{tpu_custom_call.1} parent=1 // pred_fallthru
      _
    // Predicated region
    $region30: #{tpu_custom_call.1} parent=1 // pred_check
      _
    $region31: #{tpu_custom_call.1} parent=1 // pred_check_branch
      %943 = sbr.rel (0) target = $region33
    $region32: #{tpu_custom_call.1} parent=1 // pred_region
      %s945 = ssub.s32 16, 16
      %946 = vsyncadd [#allocation4], %s945
      %949 = dma.smem_to_hbm [#allocation5], 16, %s7, [#allocation4]
    $region33: #{tpu_custom_call.1} parent=1 // pred_fallthru
      _
    // Predicated region
    $region34: #{tpu_custom_call.1} parent=1 // pred_check
      _
    $region35: #{tpu_custom_call.1} parent=1 // pred_check_branch
      %951 = sbr.rel (0) target = $region37
    $region36: #{tpu_custom_call.1} parent=1 // pred_region
      %952 = dma.done [#allocation3], 64
    $region37: #{tpu_custom_call.1} parent=1 // pred_fallthru
      _
    // Predicated region
    $region38: #{tpu_custom_call.1} parent=1 // pred_check
      _
    $region39: #{tpu_custom_call.1} parent=1 // pred_check_branch
      %954 = sbr.rel (0) target = $region41
    $region40: #{tpu_custom_call.1} parent=1 // pred_region
      %955 = dma.done [#allocation4], 16
    $region41: #{tpu_custom_call.1} parent=1 // pred_fallthru
      _
    %956 = sfence
    %957 = vsyncpa [#allocation3], 1
    %958 = vsyncpa [#allocation4], 1

</llo_original>
